<compile_context>
chip_gen: v7x
topology: tpu7x:2x2x1
jax: 0.10.0
libtpu: 0.0.40
codegen_flags: <defaults>
</compile_context>

<pallas_src>
import jax
import jax.numpy as jnp
import numpy as np
from jax.experimental import pallas as pl
from jax.experimental.pallas import tpu as pltpu

HIDDEN = 32          # hidden_dim (small synthetic size)
TEXT_DIM = 64        # text_feature_dim (small synthetic size)
IMG_DIM = 128        # img_feature_dim  (small synthetic size)
BEH_DIM = 7          # behavior_feature_dim (as in the module)
BEH_PAD = 8          # behavior dim zero-padded to a sublane-friendly size
LN_EPS = 1e-5        # torch.nn.LayerNorm default eps
OUT_LANES = 128      # lane-dense packed-weight / output slab width


def _round_up(x, m):
    return ((x + m - 1) // m) * m


def _mm_kernel(text_ref, img_ref, beh_ref,
               wt_ref, bt_ref, wi_ref, bi_ref, wb_ref, bb_ref,
               gt_ref, bet_ref, gi_ref, bei_ref, gb_ref, beb_ref,
               watt_ref, batt_ref, whead_ref, bhead_ref, bbl_ref,
               out_ref):
    H = HIDDEN
    f32 = jnp.float32

    def proj_ln(x_ref, w_ref, b_ref, g_ref, be_ref):
        # Linear -> ReLU -> LayerNorm.  gamma/beta already carry the per-modality
        # scalar weight bias of CrossModalAttention (folded in by prepare_params).
        h = jnp.dot(x_ref[...], w_ref[...], preferred_element_type=f32) + b_ref[...]
        h = jnp.maximum(h, 0.0)
        mu = jnp.mean(h, axis=-1, keepdims=True)
        var = jnp.mean(jnp.square(h - mu), axis=-1, keepdims=True)
        return (h - mu) * jax.lax.rsqrt(var + LN_EPS) * g_ref[...] + be_ref[...]

    text = proj_ln(text_ref, wt_ref, bt_ref, gt_ref, bet_ref)   # (TB, H)
    img = proj_ln(img_ref, wi_ref, bi_ref, gi_ref, bei_ref)     # (TB, H)
    beh = proj_ln(beh_ref, wb_ref, bb_ref, gb_ref, beb_ref)     # (TB, H)
    # TODO(synk): nn.Dropout is identity in eval/inference mode; not implemented.

    combo = jnp.concatenate([text, img, beh], axis=-1)          # (TB, 3H)

    # --- CrossModalAttention: one packed dot (valid lanes 0..2), elementwise softmax ---
    logits = jnp.dot(combo, watt_ref[...], preferred_element_type=f32) + batt_ref[...]
    lane = jax.lax.broadcasted_iota(jnp.int32, logits.shape, 1)  # (TB, 128), reused below
    l0 = jnp.sum(jnp.where(lane == 0, logits, 0.0), axis=-1, keepdims=True)
    l1 = jnp.sum(jnp.where(lane == 1, logits, 0.0), axis=-1, keepdims=True)
    l2 = jnp.sum(jnp.where(lane == 2, logits, 0.0), axis=-1, keepdims=True)
    m = jnp.maximum(jnp.maximum(l0, l1), l2)
    e0 = jnp.exp(l0 - m)
    e1 = jnp.exp(l1 - m)
    e2 = jnp.exp(l2 - m)
    r = pl.reciprocal(e0 + e1 + e2, approx=True)                # EUP slot, off the VPU path
    w0 = e0 * r
    w1 = e1 * r
    w2 = e2 * r                                                 # (TB, 1) each

    # Weighted concat used by both heads: [text_w | img_w | beh_w]
    combo_w = jnp.concatenate([text * w0, img * w1, beh * w2], axis=-1)   # (TB, 3H)

    # --- all heads in ONE packed dot ---
    # slab lanes: [0..H) = t2, [H..2H) = i2, [2H..3H) = b2, 3H = fusion logit, 3H+1 = b2@wbl
    slab = jnp.dot(combo_w, whead_ref[...], preferred_element_type=f32) + bhead_ref[...]
    st2 = jnp.sum(jnp.where(lane < H, slab, 0.0), axis=-1, keepdims=True)           # sum(t2)
    si2 = jnp.sum(jnp.where((lane >= H) & (lane < 2 * H), slab, 0.0),
                  axis=-1, keepdims=True)                                            # sum(i2)
    fuse = jnp.sum(jnp.where(lane == 3 * H, slab, 0.0), axis=-1, keepdims=True)      # fusion_fc
    bdot = jnp.sum(jnp.where(lane == 3 * H + 1, slab, 0.0), axis=-1, keepdims=True)  # b2 @ wbl

    out_main = jax.nn.sigmoid(fuse)                             # (TB, 1)
    # matmul(t2[:,:,None], i2[:,None,:]).sum(2)  == t2 * sum(i2)
    # matmul(b2[:,:,None], bil1[:,None,:]).sum(2) == b2 * (sum(t2) * sum(i2))
    # so bilinear_fc output == sum(t2) * sum(i2) * (b2 @ wbl) + bbl.
    out_bil = jax.nn.sigmoid(st2 * si2 * bdot + bbl_ref[...])   # (TB, 1)

    # --- fused lane-dense output slab: [main | bil | w0 | w1 | w2 | zeros...] ---
    out_ref[...] = (out_main * (lane == 0).astype(f32)
                    + out_bil * (lane == 1).astype(f32)
                    + w0 * (lane == 2).astype(f32)
                    + w1 * (lane == 3).astype(f32)
                    + w2 * (lane == 4).astype(f32))


def prepare_params(p):
    """One-time packing of module parameters into the kernel-ready layout."""
    H = HIDDEN
    hi = jax.lax.Precision.HIGHEST
    kp = {}
    kp["wt"], kp["bt"] = p["wt"], p["bt"]
    kp["wi"], kp["bi"] = p["wi"], p["bi"]
    kp["wb"] = jnp.pad(p["wb"], ((0, BEH_PAD - BEH_DIM), (0, 0)))  # zero rows: exact math
    kp["bb"] = p["bb"]
    # Fold the per-modality scalar weight biases into the LayerNorm affine:
    # LN(x) * s == x_norm * (gamma * s) + (beta * s)
    for name, idx in (("t", 0), ("i", 1), ("b", 2)):
        s = p["scal"][idx]
        kp["g_" + name] = p["ln_g"] * s
        kp["be_" + name] = p["ln_b"] * s
    # Attention Linear(3H,3) packed into a lane-dense (3H,128) weight (columns 0..2).
    watt = jnp.zeros((3 * H, OUT_LANES), jnp.float32).at[:, 0:3].set(p["wa"])
    batt = jnp.zeros((1, OUT_LANES), jnp.float32).at[:, 0:3].set(p["ba"])
    kp["watt"], kp["batt"] = watt, batt
    # All heads packed into one (3H,128) weight:
    #   lanes [0..3H)  : block-diag(wft, wfi, wfb)  -> [t2 | i2 | b2]
    #   lane  3H       : fusion_fc weight wf        -> fusion logit
    #   lane  3H+1     : [0; 0; wfb @ wbl]          -> b2 @ wbl  (composite column)
    wfb_wbl = jnp.matmul(p["wfb"], p["wbl"], precision=hi)   # (H, 1)
    bfb_wbl = jnp.matmul(p["bfb"], p["wbl"], precision=hi)   # (1, 1)
    whead = jnp.zeros((3 * H, OUT_LANES), jnp.float32)
    whead = whead.at[0:H, 0:H].set(p["wft"])
    whead = whead.at[H:2 * H, H:2 * H].set(p["wfi"])
    whead = whead.at[2 * H:3 * H, 2 * H:3 * H].set(p["wfb"])
    whead = whead.at[:, 3 * H:3 * H + 1].set(p["wf"])
    whead = whead.at[2 * H:3 * H, 3 * H + 1:3 * H + 2].set(wfb_wbl)
    bhead = jnp.zeros((1, OUT_LANES), jnp.float32)
    bhead = bhead.at[:, 0:H].set(p["bft"])
    bhead = bhead.at[:, H:2 * H].set(p["bfi"])
    bhead = bhead.at[:, 2 * H:3 * H].set(p["bfb"])
    bhead = bhead.at[:, 3 * H:3 * H + 1].set(p["bf"])
    bhead = bhead.at[:, 3 * H + 1:3 * H + 2].set(bfb_wbl)
    kp["whead"], kp["bhead"] = whead, bhead
    kp["bbl"] = p["bbl"]
    return kp


_WEIGHT_ORDER = ("wt", "bt", "wi", "bi", "wb", "bb",
                 "g_t", "be_t", "g_i", "be_i", "g_b", "be_b",
                 "watt", "batt", "whead", "bhead", "bbl")


def multi_modal_forward(kparams, text, img, behavior, *, block_b=256):
    """kparams: output of prepare_params(). block_b: batch rows per grid step
    (256 is a good default; the kernel is HBM-bound so bigger tiles amortize the
    ~0.35us per-step overhead)."""
    B = text.shape[0]
    TB = min(block_b, _round_up(B, 8))
    Bp = _round_up(B, TB)
    if Bp != B:
        text = jnp.pad(text, ((0, Bp - B), (0, 0)))
        img = jnp.pad(img, ((0, Bp - B), (0, 0)))
        behavior = jnp.pad(behavior, ((0, Bp - B), (0, 0)))
    beh = jnp.pad(behavior, ((0, 0), (0, BEH_PAD - BEH_DIM)))

    def batch_spec(d):
        return pl.BlockSpec((TB, d), lambda b: (b, 0))

    def const_spec(arr):
        # full-shape block, same block every grid step (weights stay VMEM-resident)
        return pl.BlockSpec(arr.shape, lambda b: (0, 0))

    weights = [kparams[k] for k in _WEIGHT_ORDER]

    out = pl.pallas_call(
        _mm_kernel,
        out_shape=jax.ShapeDtypeStruct((Bp, OUT_LANES), jnp.float32),
        grid=(Bp // TB,),
        in_specs=[batch_spec(TEXT_DIM), batch_spec(IMG_DIM), batch_spec(BEH_PAD)]
                 + [const_spec(w) for w in weights],
        out_specs=pl.BlockSpec((TB, OUT_LANES), lambda b: (b, 0)),
        compiler_params=pltpu.CompilerParams(dimension_semantics=("parallel",)),
    )(text, img, beh, *weights)

    return {"output": out[:B, 0:1],
            "output_bilinear": out[:B, 1:2],
            "attention_weights": out[:B, 2:5]}


def _linear_params(key, fan_in, fan_out):
    k1, k2 = jax.random.split(key)
    bound = 1.0 / np.sqrt(fan_in)
    w = jax.random.uniform(k1, (fan_in, fan_out), jnp.float32, -bound, bound)
    b = jax.random.uniform(k2, (1, fan_out), jnp.float32, -bound, bound)
    return w, b


def init_params(key):
    ks = jax.random.split(key, 9)
    p = {}
    p["wt"], p["bt"] = _linear_params(ks[0], TEXT_DIM, HIDDEN)
    p["wi"], p["bi"] = _linear_params(ks[1], IMG_DIM, HIDDEN)
    p["wb"], p["bb"] = _linear_params(ks[2], BEH_DIM, HIDDEN)
    p["ln_g"] = jnp.ones((1, HIDDEN), jnp.float32)
    p["ln_b"] = jnp.zeros((1, HIDDEN), jnp.float32)
    p["wa"], p["ba"] = _linear_params(ks[3], 3 * HIDDEN, 3)
    p["scal"] = jnp.ones((3,), jnp.float32)                 # text/img/behavior weight biases
    p["wf"], p["bf"] = _linear_params(ks[4], 3 * HIDDEN, 1)
    p["wft"], p["bft"] = _linear_params(ks[5], HIDDEN, HIDDEN)
    p["wfi"], p["bfi"] = _linear_params(ks[6], HIDDEN, HIDDEN)
    p["wfb"], p["bfb"] = _linear_params(ks[7], HIDDEN, HIDDEN)
    p["wbl"], p["bbl"] = _linear_params(ks[8], HIDDEN, 1)
    return p


def reference_forward(p, text, img, beh):
    """Pure-JAX mirror of the PyTorch forward (explicit bilinear outer products)."""
    def lin(x, w, b):
        return x @ w + b

    def ln(x):
        mu = jnp.mean(x, axis=-1, keepdims=True)
        var = jnp.mean(jnp.square(x - mu), axis=-1, keepdims=True)
        return (x - mu) / jnp.sqrt(var + LN_EPS) * p["ln_g"] + p["ln_b"]

    t = ln(jax.nn.relu(lin(text, p["wt"], p["bt"])))
    i = ln(jax.nn.relu(lin(img, p["wi"], p["bi"])))
    b = ln(jax.nn.relu(lin(beh, p["wb"], p["bb"])))
    t = t * p["scal"][0]; i = i * p["scal"][1]; b = b * p["scal"][2]
    comb = jnp.concatenate([t, i, b], axis=1)
    w = jax.nn.softmax(lin(comb, p["wa"], p["ba"]), axis=1)
    tw = t * w[:, 0:1]; iw = i * w[:, 1:2]; bw = b * w[:, 2:3]
    fused = jnp.concatenate([tw, iw, bw], axis=1)
    out_main = jax.nn.sigmoid(lin(fused, p["wf"], p["bf"]))
    t2 = lin(tw, p["wft"], p["bft"]); i2 = lin(iw, p["wfi"], p["bfi"]); b2 = lin(bw, p["wfb"], p["bfb"])
    bil = jnp.einsum("bi,bj->bij", t2, i2).sum(axis=2)
    bil = jnp.einsum("bi,bj->bij", b2, bil).sum(axis=2)
    out_bil = jax.nn.sigmoid(lin(bil, p["wbl"], p["bbl"]))
    return {"output": out_main, "output_bilinear": out_bil, "attention_weights": w}


if __name__ == "__main__":
    key = jax.random.PRNGKey(0)
    kparam_key, kt, ki, kb = jax.random.split(key, 4)
    params = init_params(kparam_key)
    kparams = prepare_params(params)      # one-time kernel-ready packing

    B = 8
    text = jax.random.normal(kt, (B, TEXT_DIM), jnp.float32)
    img = jax.random.normal(ki, (B, IMG_DIM), jnp.float32)
    behavior = jax.random.normal(kb, (B, BEH_DIM), jnp.float32)

    out = multi_modal_forward(kparams, text, img, behavior)
    jax.block_until_ready(out)

    ref = reference_forward(params, text, img, behavior)
    # Slightly loose tolerance: approx (EUP) reciprocal in the softmax + reassociated
    # factorized-bilinear math (packed composite column) vs. the explicit outer-product
    # reference computed at default precision.
    np.testing.assert_allclose(np.asarray(out["output"]), np.asarray(ref["output"]),
                               rtol=3e-3, atol=3e-3)
    np.testing.assert_allclose(np.asarray(out["output_bilinear"]), np.asarray(ref["output_bilinear"]),
                               rtol=3e-3, atol=3e-3)
    np.testing.assert_allclose(np.asarray(out["attention_weights"]), np.asarray(ref["attention_weights"]),
                               rtol=3e-3, atol=3e-3)
    print("KERNEL_OK")
</pallas_src>

<mosaic_0001>
module attributes {stable_mosaic.version = 11 : i64} {
  func.func @_mm_kernel(%arg0: i32, %arg1: memref<8x64xf32, #tpu.memory_space<vmem>>, %arg2: memref<8x128xf32, #tpu.memory_space<vmem>>, %arg3: memref<8x8xf32, #tpu.memory_space<vmem>>, %arg4: memref<64x32xf32, #tpu.memory_space<vmem>>, %arg5: memref<1x32xf32, #tpu.memory_space<vmem>>, %arg6: memref<128x32xf32, #tpu.memory_space<vmem>>, %arg7: memref<1x32xf32, #tpu.memory_space<vmem>>, %arg8: memref<8x32xf32, #tpu.memory_space<vmem>>, %arg9: memref<1x32xf32, #tpu.memory_space<vmem>>, %arg10: memref<1x32xf32, #tpu.memory_space<vmem>>, %arg11: memref<1x32xf32, #tpu.memory_space<vmem>>, %arg12: memref<1x32xf32, #tpu.memory_space<vmem>>, %arg13: memref<1x32xf32, #tpu.memory_space<vmem>>, %arg14: memref<1x32xf32, #tpu.memory_space<vmem>>, %arg15: memref<1x32xf32, #tpu.memory_space<vmem>>, %arg16: memref<96x128xf32, #tpu.memory_space<vmem>>, %arg17: memref<1x128xf32, #tpu.memory_space<vmem>>, %arg18: memref<96x128xf32, #tpu.memory_space<vmem>>, %arg19: memref<1x128xf32, #tpu.memory_space<vmem>>, %arg20: memref<1x1xf32, #tpu.memory_space<vmem>>, %arg21: memref<8x128xf32, #tpu.memory_space<vmem>>) attributes {dimension_semantics = [#tpu.dimension_semantics<parallel>], iteration_bounds = array<i64: 1>, scalar_prefetch = 0 : i64, scratch_operands = 0 : i64, tpu.core_type = #tpu.core_type<tc>, window_params = [{transform_indices = @transform_0, window_bounds = array<i64: 8, 64>}, {transform_indices = @transform_1, window_bounds = array<i64: 8, 128>}, {transform_indices = @transform_2, window_bounds = array<i64: 8, 8>}, {pipeline_mode = #tpu.pipeline_mode<synchronous>, transform_indices = @transform_3, window_bounds = array<i64: 64, 32>}, {pipeline_mode = #tpu.pipeline_mode<synchronous>, transform_indices = @transform_4, window_bounds = array<i64: 1, 32>}, {pipeline_mode = #tpu.pipeline_mode<synchronous>, transform_indices = @transform_5, window_bounds = array<i64: 128, 32>}, {pipeline_mode = #tpu.pipeline_mode<synchronous>, transform_indices = @transform_6, window_bounds = array<i64: 1, 32>}, {pipeline_mode = #tpu.pipeline_mode<synchronous>, transform_indices = @transform_7, window_bounds = array<i64: 8, 32>}, {pipeline_mode = #tpu.pipeline_mode<synchronous>, transform_indices = @transform_8, window_bounds = array<i64: 1, 32>}, {pipeline_mode = #tpu.pipeline_mode<synchronous>, transform_indices = @transform_9, window_bounds = array<i64: 1, 32>}, {pipeline_mode = #tpu.pipeline_mode<synchronous>, transform_indices = @transform_10, window_bounds = array<i64: 1, 32>}, {pipeline_mode = #tpu.pipeline_mode<synchronous>, transform_indices = @transform_11, window_bounds = array<i64: 1, 32>}, {pipeline_mode = #tpu.pipeline_mode<synchronous>, transform_indices = @transform_12, window_bounds = array<i64: 1, 32>}, {pipeline_mode = #tpu.pipeline_mode<synchronous>, transform_indices = @transform_13, window_bounds = array<i64: 1, 32>}, {pipeline_mode = #tpu.pipeline_mode<synchronous>, transform_indices = @transform_14, window_bounds = array<i64: 1, 32>}, {pipeline_mode = #tpu.pipeline_mode<synchronous>, transform_indices = @transform_15, window_bounds = array<i64: 96, 128>}, {pipeline_mode = #tpu.pipeline_mode<synchronous>, transform_indices = @transform_16, window_bounds = array<i64: 1, 128>}, {pipeline_mode = #tpu.pipeline_mode<synchronous>, transform_indices = @transform_17, window_bounds = array<i64: 96, 128>}, {pipeline_mode = #tpu.pipeline_mode<synchronous>, transform_indices = @transform_18, window_bounds = array<i64: 1, 128>}, {pipeline_mode = #tpu.pipeline_mode<synchronous>, transform_indices = @transform_19, window_bounds = array<i64: 1, 1>}, {transform_indices = @transform_20, window_bounds = array<i64: 8, 128>}]} {
    %c0 = arith.constant 0 : index
    %c0_0 = arith.constant 0 : index
    %0 = vector.load %arg1[%c0, %c0_0] : memref<8x64xf32, #tpu.memory_space<vmem>>, vector<8x64xf32>
    %c0_1 = arith.constant 0 : index
    %c0_2 = arith.constant 0 : index
    %1 = vector.load %arg4[%c0_1, %c0_2] : memref<64x32xf32, #tpu.memory_space<vmem>>, vector<64x32xf32>
    %cst = arith.constant dense<0.000000e+00> : vector<8x32xf32>
    %2 = tpu.matmul %0, %1, %cst {dimension_numbers = #tpu.dot_dimension_numbers<[1], [0], [0], [1], [0, 0, 1, 1], [], []>} : vector<8x64xf32>, vector<64x32xf32>, vector<8x32xf32> -> vector<8x32xf32>
    %c0_3 = arith.constant 0 : index
    %c0_4 = arith.constant 0 : index
    %3 = vector.load %arg5[%c0_3, %c0_4] : memref<1x32xf32, #tpu.memory_space<vmem>>, vector<1x32xf32>
    %4 = vector.broadcast %3 : vector<1x32xf32> to vector<8x32xf32>
    %5 = arith.addf %2, %4 : vector<8x32xf32>
    %cst_5 = arith.constant 0.000000e+00 : f32
    %6 = vector.broadcast %cst_5 : f32 to vector<8x32xf32>
    %7 = arith.maximumf %5, %6 : vector<8x32xf32>
    %cst_6 = arith.constant dense<0.000000e+00> : vector<8xf32>
    %8 = vector.multi_reduction <add>, %7, %cst_6 [1] : vector<8x32xf32> to vector<8xf32>
    %9 = vector.shape_cast %8 : vector<8xf32> to vector<8x1xf32>
    %cst_7 = arith.constant 3.200000e+01 : f32
    %10 = vector.broadcast %cst_7 : f32 to vector<8x1xf32>
    %11 = arith.divf %9, %10 : vector<8x1xf32>
    %12 = vector.broadcast %11 : vector<8x1xf32> to vector<8x32xf32>
    %13 = arith.subf %7, %12 : vector<8x32xf32>
    %14 = arith.mulf %13, %13 : vector<8x32xf32>
    %cst_8 = arith.constant dense<0.000000e+00> : vector<8xf32>
    %15 = vector.multi_reduction <add>, %14, %cst_8 [1] : vector<8x32xf32> to vector<8xf32>
    %16 = vector.shape_cast %15 : vector<8xf32> to vector<8x1xf32>
    %cst_9 = arith.constant 3.200000e+01 : f32
    %17 = vector.broadcast %cst_9 : f32 to vector<8x1xf32>
    %18 = arith.divf %16, %17 : vector<8x1xf32>
    %19 = vector.broadcast %11 : vector<8x1xf32> to vector<8x32xf32>
    %20 = arith.subf %7, %19 : vector<8x32xf32>
    %cst_10 = arith.constant 9.99999974E-6 : f32
    %21 = vector.broadcast %cst_10 : f32 to vector<8x1xf32>
    %22 = arith.addf %18, %21 : vector<8x1xf32>
    %23 = math.rsqrt %22 : vector<8x1xf32>
    %24 = vector.broadcast %23 : vector<8x1xf32> to vector<8x32xf32>
    %25 = arith.mulf %20, %24 : vector<8x32xf32>
    %c0_11 = arith.constant 0 : index
    %c0_12 = arith.constant 0 : index
    %26 = vector.load %arg10[%c0_11, %c0_12] : memref<1x32xf32, #tpu.memory_space<vmem>>, vector<1x32xf32>
    %27 = vector.broadcast %26 : vector<1x32xf32> to vector<8x32xf32>
    %28 = arith.mulf %25, %27 : vector<8x32xf32>
    %c0_13 = arith.constant 0 : index
    %c0_14 = arith.constant 0 : index
    %29 = vector.load %arg11[%c0_13, %c0_14] : memref<1x32xf32, #tpu.memory_space<vmem>>, vector<1x32xf32>
    %30 = vector.broadcast %29 : vector<1x32xf32> to vector<8x32xf32>
    %31 = arith.addf %28, %30 : vector<8x32xf32>
    %c0_15 = arith.constant 0 : index
    %c0_16 = arith.constant 0 : index
    %32 = vector.load %arg2[%c0_15, %c0_16] : memref<8x128xf32, #tpu.memory_space<vmem>>, vector<8x128xf32>
    %c0_17 = arith.constant 0 : index
    %c0_18 = arith.constant 0 : index
    %33 = vector.load %arg6[%c0_17, %c0_18] : memref<128x32xf32, #tpu.memory_space<vmem>>, vector<128x32xf32>
    %cst_19 = arith.constant dense<0.000000e+00> : vector<8x32xf32>
    %34 = tpu.matmul %32, %33, %cst_19 {dimension_numbers = #tpu.dot_dimension_numbers<[1], [0], [0], [1], [0, 0, 1, 1], [], []>} : vector<8x128xf32>, vector<128x32xf32>, vector<8x32xf32> -> vector<8x32xf32>
    %c0_20 = arith.constant 0 : index
    %c0_21 = arith.constant 0 : index
    %35 = vector.load %arg7[%c0_20, %c0_21] : memref<1x32xf32, #tpu.memory_space<vmem>>, vector<1x32xf32>
    %36 = vector.broadcast %35 : vector<1x32xf32> to vector<8x32xf32>
    %37 = arith.addf %34, %36 : vector<8x32xf32>
    %cst_22 = arith.constant 0.000000e+00 : f32
    %38 = vector.broadcast %cst_22 : f32 to vector<8x32xf32>
    %39 = arith.maximumf %37, %38 : vector<8x32xf32>
    %cst_23 = arith.constant dense<0.000000e+00> : vector<8xf32>
    %40 = vector.multi_reduction <add>, %39, %cst_23 [1] : vector<8x32xf32> to vector<8xf32>
    %41 = vector.shape_cast %40 : vector<8xf32> to vector<8x1xf32>
    %cst_24 = arith.constant 3.200000e+01 : f32
    %42 = vector.broadcast %cst_24 : f32 to vector<8x1xf32>
    %43 = arith.divf %41, %42 : vector<8x1xf32>
    %44 = vector.broadcast %43 : vector<8x1xf32> to vector<8x32xf32>
    %45 = arith.subf %39, %44 : vector<8x32xf32>
    %46 = arith.mulf %45, %45 : vector<8x32xf32>
    %cst_25 = arith.constant dense<0.000000e+00> : vector<8xf32>
    %47 = vector.multi_reduction <add>, %46, %cst_25 [1] : vector<8x32xf32> to vector<8xf32>
    %48 = vector.shape_cast %47 : vector<8xf32> to vector<8x1xf32>
    %cst_26 = arith.constant 3.200000e+01 : f32
    %49 = vector.broadcast %cst_26 : f32 to vector<8x1xf32>
    %50 = arith.divf %48, %49 : vector<8x1xf32>
    %51 = vector.broadcast %43 : vector<8x1xf32> to vector<8x32xf32>
    %52 = arith.subf %39, %51 : vector<8x32xf32>
    %cst_27 = arith.constant 9.99999974E-6 : f32
    %53 = vector.broadcast %cst_27 : f32 to vector<8x1xf32>
    %54 = arith.addf %50, %53 : vector<8x1xf32>
    %55 = math.rsqrt %54 : vector<8x1xf32>
    %56 = vector.broadcast %55 : vector<8x1xf32> to vector<8x32xf32>
    %57 = arith.mulf %52, %56 : vector<8x32xf32>
    %c0_28 = arith.constant 0 : index
    %c0_29 = arith.constant 0 : index
    %58 = vector.load %arg12[%c0_28, %c0_29] : memref<1x32xf32, #tpu.memory_space<vmem>>, vector<1x32xf32>
    %59 = vector.broadcast %58 : vector<1x32xf32> to vector<8x32xf32>
    %60 = arith.mulf %57, %59 : vector<8x32xf32>
    %c0_30 = arith.constant 0 : index
    %c0_31 = arith.constant 0 : index
    %61 = vector.load %arg13[%c0_30, %c0_31] : memref<1x32xf32, #tpu.memory_space<vmem>>, vector<1x32xf32>
    %62 = vector.broadcast %61 : vector<1x32xf32> to vector<8x32xf32>
    %63 = arith.addf %60, %62 : vector<8x32xf32>
    %c0_32 = arith.constant 0 : index
    %c0_33 = arith.constant 0 : index
    %64 = vector.load %arg3[%c0_32, %c0_33] : memref<8x8xf32, #tpu.memory_space<vmem>>, vector<8x8xf32>
    %c0_34 = arith.constant 0 : index
    %c0_35 = arith.constant 0 : index
    %65 = vector.load %arg8[%c0_34, %c0_35] : memref<8x32xf32, #tpu.memory_space<vmem>>, vector<8x32xf32>
    %cst_36 = arith.constant dense<0.000000e+00> : vector<8x32xf32>
    %66 = tpu.matmul %64, %65, %cst_36 {dimension_numbers = #tpu.dot_dimension_numbers<[1], [0], [0], [1], [0, 0, 1, 1], [], []>} : vector<8x8xf32>, vector<8x32xf32>, vector<8x32xf32> -> vector<8x32xf32>
    %c0_37 = arith.constant 0 : index
    %c0_38 = arith.constant 0 : index
    %67 = vector.load %arg9[%c0_37, %c0_38] : memref<1x32xf32, #tpu.memory_space<vmem>>, vector<1x32xf32>
    %68 = vector.broadcast %67 : vector<1x32xf32> to vector<8x32xf32>
    %69 = arith.addf %66, %68 : vector<8x32xf32>
    %cst_39 = arith.constant 0.000000e+00 : f32
    %70 = vector.broadcast %cst_39 : f32 to vector<8x32xf32>
    %71 = arith.maximumf %69, %70 : vector<8x32xf32>
    %cst_40 = arith.constant dense<0.000000e+00> : vector<8xf32>
    %72 = vector.multi_reduction <add>, %71, %cst_40 [1] : vector<8x32xf32> to vector<8xf32>
    %73 = vector.shape_cast %72 : vector<8xf32> to vector<8x1xf32>
    %cst_41 = arith.constant 3.200000e+01 : f32
    %74 = vector.broadcast %cst_41 : f32 to vector<8x1xf32>
    %75 = arith.divf %73, %74 : vector<8x1xf32>
    %76 = vector.broadcast %75 : vector<8x1xf32> to vector<8x32xf32>
    %77 = arith.subf %71, %76 : vector<8x32xf32>
    %78 = arith.mulf %77, %77 : vector<8x32xf32>
    %cst_42 = arith.constant dense<0.000000e+00> : vector<8xf32>
    %79 = vector.multi_reduction <add>, %78, %cst_42 [1] : vector<8x32xf32> to vector<8xf32>
    %80 = vector.shape_cast %79 : vector<8xf32> to vector<8x1xf32>
    %cst_43 = arith.constant 3.200000e+01 : f32
    %81 = vector.broadcast %cst_43 : f32 to vector<8x1xf32>
    %82 = arith.divf %80, %81 : vector<8x1xf32>
    %83 = vector.broadcast %75 : vector<8x1xf32> to vector<8x32xf32>
    %84 = arith.subf %71, %83 : vector<8x32xf32>
    %cst_44 = arith.constant 9.99999974E-6 : f32
    %85 = vector.broadcast %cst_44 : f32 to vector<8x1xf32>
    %86 = arith.addf %82, %85 : vector<8x1xf32>
    %87 = math.rsqrt %86 : vector<8x1xf32>
    %88 = vector.broadcast %87 : vector<8x1xf32> to vector<8x32xf32>
    %89 = arith.mulf %84, %88 : vector<8x32xf32>
    %c0_45 = arith.constant 0 : index
    %c0_46 = arith.constant 0 : index
    %90 = vector.load %arg14[%c0_45, %c0_46] : memref<1x32xf32, #tpu.memory_space<vmem>>, vector<1x32xf32>
    %91 = vector.broadcast %90 : vector<1x32xf32> to vector<8x32xf32>
    %92 = arith.mulf %89, %91 : vector<8x32xf32>
    %c0_47 = arith.constant 0 : index
    %c0_48 = arith.constant 0 : index
    %93 = vector.load %arg15[%c0_47, %c0_48] : memref<1x32xf32, #tpu.memory_space<vmem>>, vector<1x32xf32>
    %94 = vector.broadcast %93 : vector<1x32xf32> to vector<8x32xf32>
    %95 = arith.addf %92, %94 : vector<8x32xf32>
    %96 = tpu.concatenate %31, %63, %95 in 1 : vector<8x32xf32>, vector<8x32xf32>, vector<8x32xf32> -> vector<8x96xf32>
    %c0_49 = arith.constant 0 : index
    %c0_50 = arith.constant 0 : index
    %97 = vector.load %arg16[%c0_49, %c0_50] : memref<96x128xf32, #tpu.memory_space<vmem>>, vector<96x128xf32>
    %cst_51 = arith.constant dense<0.000000e+00> : vector<8x128xf32>
    %98 = tpu.matmul %96, %97, %cst_51 {dimension_numbers = #tpu.dot_dimension_numbers<[1], [0], [0], [1], [0, 0, 1, 1], [], []>} : vector<8x96xf32>, vector<96x128xf32>, vector<8x128xf32> -> vector<8x128xf32>
    %c0_52 = arith.constant 0 : index
    %c0_53 = arith.constant 0 : index
    %99 = vector.load %arg17[%c0_52, %c0_53] : memref<1x128xf32, #tpu.memory_space<vmem>>, vector<1x128xf32>
    %100 = vector.broadcast %99 : vector<1x128xf32> to vector<8x128xf32>
    %101 = arith.addf %98, %100 : vector<8x128xf32>
    %102 = tpu.iota {dimensions = array<i32: 1>} : vector<8x128xi32>
    %c0_i32 = arith.constant 0 : i32
    %103 = vector.broadcast %c0_i32 : i32 to vector<8x128xi32>
    %104 = arith.cmpi eq, %102, %103 : vector<8x128xi32>
    %cst_54 = arith.constant 0.000000e+00 : f32
    %105 = vector.broadcast %cst_54 : f32 to vector<8x128xf32>
    %106 = arith.select %104, %101, %105 : vector<8x128xi1>, vector<8x128xf32>
    %cst_55 = arith.constant dense<0.000000e+00> : vector<8xf32>
    %107 = vector.multi_reduction <add>, %106, %cst_55 [1] : vector<8x128xf32> to vector<8xf32>
    %108 = vector.shape_cast %107 : vector<8xf32> to vector<8x1xf32>
    %c1_i32 = arith.constant 1 : i32
    %109 = vector.broadcast %c1_i32 : i32 to vector<8x128xi32>
    %110 = arith.cmpi eq, %102, %109 : vector<8x128xi32>
    %cst_56 = arith.constant 0.000000e+00 : f32
    %111 = vector.broadcast %cst_56 : f32 to vector<8x128xf32>
    %112 = arith.select %110, %101, %111 : vector<8x128xi1>, vector<8x128xf32>
    %cst_57 = arith.constant dense<0.000000e+00> : vector<8xf32>
    %113 = vector.multi_reduction <add>, %112, %cst_57 [1] : vector<8x128xf32> to vector<8xf32>
    %114 = vector.shape_cast %113 : vector<8xf32> to vector<8x1xf32>
    %c2_i32 = arith.constant 2 : i32
    %115 = vector.broadcast %c2_i32 : i32 to vector<8x128xi32>
    %116 = arith.cmpi eq, %102, %115 : vector<8x128xi32>
    %cst_58 = arith.constant 0.000000e+00 : f32
    %117 = vector.broadcast %cst_58 : f32 to vector<8x128xf32>
    %118 = arith.select %116, %101, %117 : vector<8x128xi1>, vector<8x128xf32>
    %cst_59 = arith.constant dense<0.000000e+00> : vector<8xf32>
    %119 = vector.multi_reduction <add>, %118, %cst_59 [1] : vector<8x128xf32> to vector<8xf32>
    %120 = vector.shape_cast %119 : vector<8xf32> to vector<8x1xf32>
    %121 = arith.maximumf %108, %114 : vector<8x1xf32>
    %122 = arith.maximumf %121, %120 : vector<8x1xf32>
    %123 = arith.subf %108, %122 : vector<8x1xf32>
    %124 = math.exp %123 : vector<8x1xf32>
    %125 = arith.subf %114, %122 : vector<8x1xf32>
    %126 = math.exp %125 : vector<8x1xf32>
    %127 = arith.subf %120, %122 : vector<8x1xf32>
    %128 = math.exp %127 : vector<8x1xf32>
    %129 = arith.addf %124, %126 : vector<8x1xf32>
    %130 = arith.addf %129, %128 : vector<8x1xf32>
    %131 = tpu.reciprocal %130 {approx = true} : vector<8x1xf32> -> vector<8x1xf32>
    %132 = arith.mulf %124, %131 : vector<8x1xf32>
    %133 = arith.mulf %126, %131 : vector<8x1xf32>
    %134 = arith.mulf %128, %131 : vector<8x1xf32>
    %135 = vector.broadcast %132 : vector<8x1xf32> to vector<8x32xf32>
    %136 = arith.mulf %31, %135 : vector<8x32xf32>
    %137 = vector.broadcast %133 : vector<8x1xf32> to vector<8x32xf32>
    %138 = arith.mulf %63, %137 : vector<8x32xf32>
    %139 = vector.broadcast %134 : vector<8x1xf32> to vector<8x32xf32>
    %140 = arith.mulf %95, %139 : vector<8x32xf32>
    %141 = tpu.concatenate %136, %138, %140 in 1 : vector<8x32xf32>, vector<8x32xf32>, vector<8x32xf32> -> vector<8x96xf32>
    %c0_60 = arith.constant 0 : index
    %c0_61 = arith.constant 0 : index
    %142 = vector.load %arg18[%c0_60, %c0_61] : memref<96x128xf32, #tpu.memory_space<vmem>>, vector<96x128xf32>
    %cst_62 = arith.constant dense<0.000000e+00> : vector<8x128xf32>
    %143 = tpu.matmul %141, %142, %cst_62 {dimension_numbers = #tpu.dot_dimension_numbers<[1], [0], [0], [1], [0, 0, 1, 1], [], []>} : vector<8x96xf32>, vector<96x128xf32>, vector<8x128xf32> -> vector<8x128xf32>
    %c0_63 = arith.constant 0 : index
    %c0_64 = arith.constant 0 : index
    %144 = vector.load %arg19[%c0_63, %c0_64] : memref<1x128xf32, #tpu.memory_space<vmem>>, vector<1x128xf32>
    %145 = vector.broadcast %144 : vector<1x128xf32> to vector<8x128xf32>
    %146 = arith.addf %143, %145 : vector<8x128xf32>
    %c32_i32 = arith.constant 32 : i32
    %147 = vector.broadcast %c32_i32 : i32 to vector<8x128xi32>
    %148 = arith.cmpi slt, %102, %147 : vector<8x128xi32>
    %cst_65 = arith.constant 0.000000e+00 : f32
    %149 = vector.broadcast %cst_65 : f32 to vector<8x128xf32>
    %150 = arith.select %148, %146, %149 : vector<8x128xi1>, vector<8x128xf32>
    %cst_66 = arith.constant dense<0.000000e+00> : vector<8xf32>
    %151 = vector.multi_reduction <add>, %150, %cst_66 [1] : vector<8x128xf32> to vector<8xf32>
    %152 = vector.shape_cast %151 : vector<8xf32> to vector<8x1xf32>
    %c32_i32_67 = arith.constant 32 : i32
    %153 = vector.broadcast %c32_i32_67 : i32 to vector<8x128xi32>
    %154 = arith.cmpi sge, %102, %153 : vector<8x128xi32>
    %c64_i32 = arith.constant 64 : i32
    %155 = vector.broadcast %c64_i32 : i32 to vector<8x128xi32>
    %156 = arith.cmpi slt, %102, %155 : vector<8x128xi32>
    %157 = arith.andi %154, %156 : vector<8x128xi1>
    %cst_68 = arith.constant 0.000000e+00 : f32
    %158 = vector.broadcast %cst_68 : f32 to vector<8x128xf32>
    %159 = arith.select %157, %146, %158 : vector<8x128xi1>, vector<8x128xf32>
    %cst_69 = arith.constant dense<0.000000e+00> : vector<8xf32>
    %160 = vector.multi_reduction <add>, %159, %cst_69 [1] : vector<8x128xf32> to vector<8xf32>
    %161 = vector.shape_cast %160 : vector<8xf32> to vector<8x1xf32>
    %c96_i32 = arith.constant 96 : i32
    %162 = vector.broadcast %c96_i32 : i32 to vector<8x128xi32>
    %163 = arith.cmpi eq, %102, %162 : vector<8x128xi32>
    %cst_70 = arith.constant 0.000000e+00 : f32
    %164 = vector.broadcast %cst_70 : f32 to vector<8x128xf32>
    %165 = arith.select %163, %146, %164 : vector<8x128xi1>, vector<8x128xf32>
    %cst_71 = arith.constant dense<0.000000e+00> : vector<8xf32>
    %166 = vector.multi_reduction <add>, %165, %cst_71 [1] : vector<8x128xf32> to vector<8xf32>
    %167 = vector.shape_cast %166 : vector<8xf32> to vector<8x1xf32>
    %c97_i32 = arith.constant 97 : i32
    %168 = vector.broadcast %c97_i32 : i32 to vector<8x128xi32>
    %169 = arith.cmpi eq, %102, %168 : vector<8x128xi32>
    %cst_72 = arith.constant 0.000000e+00 : f32
    %170 = vector.broadcast %cst_72 : f32 to vector<8x128xf32>
    %171 = arith.select %169, %146, %170 : vector<8x128xi1>, vector<8x128xf32>
    %cst_73 = arith.constant dense<0.000000e+00> : vector<8xf32>
    %172 = vector.multi_reduction <add>, %171, %cst_73 [1] : vector<8x128xf32> to vector<8xf32>
    %173 = vector.shape_cast %172 : vector<8xf32> to vector<8x1xf32>
    %174 = arith.negf %167 : vector<8x1xf32>
    %175 = math.exp %174 : vector<8x1xf32>
    %cst_74 = arith.constant 1.000000e+00 : f32
    %176 = vector.broadcast %cst_74 : f32 to vector<8x1xf32>
    %177 = arith.addf %176, %175 : vector<8x1xf32>
    %178 = arith.divf %176, %177 : vector<8x1xf32>
    %179 = arith.mulf %152, %161 : vector<8x1xf32>
    %180 = arith.mulf %179, %173 : vector<8x1xf32>
    %c0_75 = arith.constant 0 : index
    %c0_76 = arith.constant 0 : index
    %181 = vector.load %arg20[%c0_75, %c0_76] : memref<1x1xf32, #tpu.memory_space<vmem>>, vector<1x1xf32>
    %182 = vector.broadcast %181 : vector<1x1xf32> to vector<8x1xf32>
    %183 = arith.addf %180, %182 : vector<8x1xf32>
    %184 = arith.negf %183 : vector<8x1xf32>
    %185 = math.exp %184 : vector<8x1xf32>
    %cst_77 = arith.constant 1.000000e+00 : f32
    %186 = vector.broadcast %cst_77 : f32 to vector<8x1xf32>
    %187 = arith.addf %186, %185 : vector<8x1xf32>
    %188 = arith.divf %186, %187 : vector<8x1xf32>
    %c0_i32_78 = arith.constant 0 : i32
    %189 = vector.broadcast %c0_i32_78 : i32 to vector<8x128xi32>
    %190 = arith.cmpi eq, %102, %189 : vector<8x128xi32>
    %191 = arith.extui %190 : vector<8x128xi1> to vector<8x128xi32>
    %192 = arith.sitofp %191 : vector<8x128xi32> to vector<8x128xf32>
    %193 = vector.broadcast %178 : vector<8x1xf32> to vector<8x128xf32>
    %194 = arith.mulf %193, %192 : vector<8x128xf32>
    %c1_i32_79 = arith.constant 1 : i32
    %195 = vector.broadcast %c1_i32_79 : i32 to vector<8x128xi32>
    %196 = arith.cmpi eq, %102, %195 : vector<8x128xi32>
    %197 = arith.extui %196 : vector<8x128xi1> to vector<8x128xi32>
    %198 = arith.sitofp %197 : vector<8x128xi32> to vector<8x128xf32>
    %199 = vector.broadcast %188 : vector<8x1xf32> to vector<8x128xf32>
    %200 = arith.mulf %199, %198 : vector<8x128xf32>
    %201 = arith.addf %194, %200 : vector<8x128xf32>
    %c2_i32_80 = arith.constant 2 : i32
    %202 = vector.broadcast %c2_i32_80 : i32 to vector<8x128xi32>
    %203 = arith.cmpi eq, %102, %202 : vector<8x128xi32>
    %204 = arith.extui %203 : vector<8x128xi1> to vector<8x128xi32>
    %205 = arith.sitofp %204 : vector<8x128xi32> to vector<8x128xf32>
    %206 = vector.broadcast %132 : vector<8x1xf32> to vector<8x128xf32>
    %207 = arith.mulf %206, %205 : vector<8x128xf32>
    %208 = arith.addf %201, %207 : vector<8x128xf32>
    %c3_i32 = arith.constant 3 : i32
    %209 = vector.broadcast %c3_i32 : i32 to vector<8x128xi32>
    %210 = arith.cmpi eq, %102, %209 : vector<8x128xi32>
    %211 = arith.extui %210 : vector<8x128xi1> to vector<8x128xi32>
    %212 = arith.sitofp %211 : vector<8x128xi32> to vector<8x128xf32>
    %213 = vector.broadcast %133 : vector<8x1xf32> to vector<8x128xf32>
    %214 = arith.mulf %213, %212 : vector<8x128xf32>
    %215 = arith.addf %208, %214 : vector<8x128xf32>
    %c4_i32 = arith.constant 4 : i32
    %216 = vector.broadcast %c4_i32 : i32 to vector<8x128xi32>
    %217 = arith.cmpi eq, %102, %216 : vector<8x128xi32>
    %218 = arith.extui %217 : vector<8x128xi1> to vector<8x128xi32>
    %219 = arith.sitofp %218 : vector<8x128xi32> to vector<8x128xf32>
    %220 = vector.broadcast %134 : vector<8x1xf32> to vector<8x128xf32>
    %221 = arith.mulf %220, %219 : vector<8x128xf32>
    %222 = arith.addf %215, %221 : vector<8x128xf32>
    %c0_81 = arith.constant 0 : index
    %c0_82 = arith.constant 0 : index
    %223 = vector.load %arg21[%c0_81, %c0_82] : memref<8x128xf32, #tpu.memory_space<vmem>>, vector<8x128xf32>
    tpu.vector_store %arg21[%c0_81, %c0_82], %222 {strides = array<i32>} : memref<8x128xf32, #tpu.memory_space<vmem>>, vector<8x128xf32>,
    return
  }
  func.func @transform_0(%arg0: i32) -> (i32, i32) {
    %c0_i32 = arith.constant 0 : i32
    %c0_i32_0 = arith.constant 0 : i32
    return %arg0, %c0_i32 : i32, i32
  }
  func.func @transform_1(%arg0: i32) -> (i32, i32) {
    %c0_i32 = arith.constant 0 : i32
    %c0_i32_0 = arith.constant 0 : i32
    return %arg0, %c0_i32 : i32, i32
  }
  func.func @transform_2(%arg0: i32) -> (i32, i32) {
    %c0_i32 = arith.constant 0 : i32
    %c0_i32_0 = arith.constant 0 : i32
    return %arg0, %c0_i32 : i32, i32
  }
  func.func @transform_3(%arg0: i32) -> (i32, i32) {
    %c0_i32 = arith.constant 0 : i32
    %c0_i32_0 = arith.constant 0 : i32
    %c0_i32_1 = arith.constant 0 : i32
    return %c0_i32, %c0_i32_0 : i32, i32
  }
  func.func @transform_4(%arg0: i32) -> (i32, i32) {
    %c0_i32 = arith.constant 0 : i32
    %c0_i32_0 = arith.constant 0 : i32
    %c0_i32_1 = arith.constant 0 : i32
    return %c0_i32, %c0_i32_0 : i32, i32
  }
  func.func @transform_5(%arg0: i32) -> (i32, i32) {
    %c0_i32 = arith.constant 0 : i32
    %c0_i32_0 = arith.constant 0 : i32
    %c0_i32_1 = arith.constant 0 : i32
    return %c0_i32, %c0_i32_0 : i32, i32
  }
  func.func @transform_6(%arg0: i32) -> (i32, i32) {
    %c0_i32 = arith.constant 0 : i32
    %c0_i32_0 = arith.constant 0 : i32
    %c0_i32_1 = arith.constant 0 : i32
    return %c0_i32, %c0_i32_0 : i32, i32
  }
  func.func @transform_7(%arg0: i32) -> (i32, i32) {
    %c0_i32 = arith.constant 0 : i32
    %c0_i32_0 = arith.constant 0 : i32
    %c0_i32_1 = arith.constant 0 : i32
    return %c0_i32, %c0_i32_0 : i32, i32
  }
  func.func @transform_8(%arg0: i32) -> (i32, i32) {
    %c0_i32 = arith.constant 0 : i32
    %c0_i32_0 = arith.constant 0 : i32
    %c0_i32_1 = arith.constant 0 : i32
    return %c0_i32, %c0_i32_0 : i32, i32
  }
  func.func @transform_9(%arg0: i32) -> (i32, i32) {
    %c0_i32 = arith.constant 0 : i32
    %c0_i32_0 = arith.constant 0 : i32
    %c0_i32_1 = arith.constant 0 : i32
    return %c0_i32, %c0_i32_0 : i32, i32
  }
  func.func @transform_10(%arg0: i32) -> (i32, i32) {
    %c0_i32 = arith.constant 0 : i32
    %c0_i32_0 = arith.constant 0 : i32
    %c0_i32_1 = arith.constant 0 : i32
    return %c0_i32, %c0_i32_0 : i32, i32
  }
  func.func @transform_11(%arg0: i32) -> (i32, i32) {
    %c0_i32 = arith.constant 0 : i32
    %c0_i32_0 = arith.constant 0 : i32
    %c0_i32_1 = arith.constant 0 : i32
    return %c0_i32, %c0_i32_0 : i32, i32
  }
  func.func @transform_12(%arg0: i32) -> (i32, i32) {
    %c0_i32 = arith.constant 0 : i32
    %c0_i32_0 = arith.constant 0 : i32
    %c0_i32_1 = arith.constant 0 : i32
    return %c0_i32, %c0_i32_0 : i32, i32
  }
  func.func @transform_13(%arg0: i32) -> (i32, i32) {
    %c0_i32 = arith.constant 0 : i32
    %c0_i32_0 = arith.constant 0 : i32
    %c0_i32_1 = arith.constant 0 : i32
    return %c0_i32, %c0_i32_0 : i32, i32
  }
  func.func @transform_14(%arg0: i32) -> (i32, i32) {
    %c0_i32 = arith.constant 0 : i32
    %c0_i32_0 = arith.constant 0 : i32
    %c0_i32_1 = arith.constant 0 : i32
    return %c0_i32, %c0_i32_0 : i32, i32
  }
  func.func @transform_15(%arg0: i32) -> (i32, i32) {
    %c0_i32 = arith.constant 0 : i32
    %c0_i32_0 = arith.constant 0 : i32
    %c0_i32_1 = arith.constant 0 : i32
    return %c0_i32, %c0_i32_0 : i32, i32
  }
  func.func @transform_16(%arg0: i32) -> (i32, i32) {
    %c0_i32 = arith.constant 0 : i32
    %c0_i32_0 = arith.constant 0 : i32
    %c0_i32_1 = arith.constant 0 : i32
    return %c0_i32, %c0_i32_0 : i32, i32
  }
  func.func @transform_17(%arg0: i32) -> (i32, i32) {
    %c0_i32 = arith.constant 0 : i32
    %c0_i32_0 = arith.constant 0 : i32
    %c0_i32_1 = arith.constant 0 : i32
    return %c0_i32, %c0_i32_0 : i32, i32
  }
  func.func @transform_18(%arg0: i32) -> (i32, i32) {
    %c0_i32 = arith.constant 0 : i32
    %c0_i32_0 = arith.constant 0 : i32
    %c0_i32_1 = arith.constant 0 : i32
    return %c0_i32, %c0_i32_0 : i32, i32
  }
  func.func @transform_19(%arg0: i32) -> (i32, i32) {
    %c0_i32 = arith.constant 0 : i32
    %c0_i32_0 = arith.constant 0 : i32
    %c0_i32_1 = arith.constant 0 : i32
    return %c0_i32, %c0_i32_0 : i32, i32
  }
  func.func @transform_20(%arg0: i32) -> (i32, i32) {
    %c0_i32 = arith.constant 0 : i32
    %c0_i32_0 = arith.constant 0 : i32
    return %arg0, %c0_i32 : i32, i32
  }
}

</mosaic_0001>

<llo_original>
// kernel: tpu_custom_call.1
$region0: #{tpu_custom_call.1}
  #allocation0 [shape = 'u32[]', space=smem, size = 0x4, offset = 0x4, fixed_abs, tag = 'smem constant byte address 0x4 - core index']
  #allocation1 [shape = 'u32[144,128]{1,0:T(1,128)}', space=vmem, size = 0x12000, scoped, tag = 'internal scratch']
  #allocation2 [shape = 'f32[1,1]{1,0:T(1,128)S(1)}', space=vmem, size = 0x200, scoped, tag = 'scoped memory for tpu_custom_call.1']
  %s0 = inlined_call_operand.vmem [shape: f32[8,64], index: 0, kind: input, shape index: {}]
  %s1 = inlined_call_operand.vmem [shape: f32[8,128], index: 1, kind: input, shape index: {}]
  %s2 = inlined_call_operand.vmem [shape: f32[8,8], index: 2, kind: input, shape index: {}]
  %s3 = inlined_call_operand.vmem [shape: f32[64,32], index: 3, kind: input, shape index: {}]
  %s4 = inlined_call_operand.vmem [shape: f32[1,32], index: 4, kind: input, shape index: {}]
  %s5 = inlined_call_operand.vmem [shape: f32[128,32], index: 5, kind: input, shape index: {}]
  %s6 = inlined_call_operand.vmem [shape: f32[1,32], index: 6, kind: input, shape index: {}]
  %s7 = inlined_call_operand.vmem [shape: f32[8,32], index: 7, kind: input, shape index: {}]
  %s8 = inlined_call_operand.vmem [shape: f32[1,32], index: 8, kind: input, shape index: {}]
  %s9 = inlined_call_operand.vmem [shape: f32[1,32], index: 9, kind: input, shape index: {}]
  %s10 = inlined_call_operand.vmem [shape: f32[1,32], index: 10, kind: input, shape index: {}]
  %s11 = inlined_call_operand.vmem [shape: f32[1,32], index: 11, kind: input, shape index: {}]
  %s12 = inlined_call_operand.vmem [shape: f32[1,32], index: 12, kind: input, shape index: {}]
  %s13 = inlined_call_operand.vmem [shape: f32[1,32], index: 13, kind: input, shape index: {}]
  %s14 = inlined_call_operand.vmem [shape: f32[1,32], index: 14, kind: input, shape index: {}]
  %s15 = inlined_call_operand.vmem [shape: f32[96,128], index: 15, kind: input, shape index: {}]
  %s16 = inlined_call_operand.vmem [shape: f32[1,128], index: 16, kind: input, shape index: {}]
  %s17 = inlined_call_operand.vmem [shape: f32[96,128], index: 17, kind: input, shape index: {}]
  %s18 = inlined_call_operand.vmem [shape: f32[1,128], index: 18, kind: input, shape index: {}]
  %s19 = inlined_call_operand.<no memory space> [shape: f32[1,1], index: 19, kind: input, shape index: {}]
  %s20 = inlined_call_operand.hbm [shape: f32[8,128], index: 20, kind: output, shape index: {}]
  %s21 = sld [smem:[#allocation0]]
  $region90: #{tpu_custom_call.1} parent=0
    _
  %s23 = ssub.s32 1, %s21
  %s24 = scalar_select 0, %s23, %s21
  %v25 = vstv %s19
  %26 = vst [vmem:[#allocation2] sm:$0x1] %v25
  $region1: #{tpu_custom_call.1} parent=0
    #allocation3 [shape = 'u8[4096]{0}', space=vmem, size = 0x1000, scoped, tag = 'output window, operand 0, single buffered']
    #allocation4 [shape = 's32[1]{0}', space=sflag, size = 0x4, scoped, tag = 'scoped memory for tpu_custom_call.1']
    %27 = vsyncpa [#allocation4], 0
    // Predicated region
    $region2: #{tpu_custom_call.1} parent=1 // pred_check
      _
    $region3: #{tpu_custom_call.1} parent=1 // pred_check_branch
      %29 = sbr.rel (0) target = $region5
    $region4: #{tpu_custom_call.1} parent=1 // pred_region
      _
    $region5: #{tpu_custom_call.1} parent=1 // pred_fallthru
      _
    // Predicated region
    $region6: #{tpu_custom_call.1} parent=1 // pred_check
      _
    $region7: #{tpu_custom_call.1} parent=1 // pred_check_branch
      %31 = sbr.rel (0) target = $region9
    $region8: #{tpu_custom_call.1} parent=1 // pred_region
      _
    $region9: #{tpu_custom_call.1} parent=1 // pred_fallthru
      _
    // Predicated region
    $region10: #{tpu_custom_call.1} parent=1 // pred_check
      _
    $region11: #{tpu_custom_call.1} parent=1 // pred_check_branch
      %33 = sbr.rel (0) target = $region13
    $region12: #{tpu_custom_call.1} parent=1 // pred_region
      _
    $region13: #{tpu_custom_call.1} parent=1 // pred_fallthru
      _
    // Predicated region
    $region14: #{tpu_custom_call.1} parent=1 // pred_check
      _
    $region15: #{tpu_custom_call.1} parent=1 // pred_check_branch
      %35 = sbr.rel (0) target = $region17
    $region16: #{tpu_custom_call.1} parent=1 // pred_region
      _
    $region17: #{tpu_custom_call.1} parent=1 // pred_fallthru
      _
    // Predicated region
    $region18: #{tpu_custom_call.1} parent=1 // pred_check
      _
    $region19: #{tpu_custom_call.1} parent=1 // pred_check_branch
      %37 = sbr.rel (0) target = $region21
    $region20: #{tpu_custom_call.1} parent=1 // pred_region
      _
    $region21: #{tpu_custom_call.1} parent=1 // pred_fallthru
      _
    // Predicated region
    $region22: #{tpu_custom_call.1} parent=1 // pred_check
      _
    $region23: #{tpu_custom_call.1} parent=1 // pred_check_branch
      %39 = sbr.rel (0) target = $region25
    $region24: #{tpu_custom_call.1} parent=1 // pred_region
      _
    $region25: #{tpu_custom_call.1} parent=1 // pred_fallthru
      _
    // Predicated region
    $region26: #{tpu_custom_call.1} parent=1 // pred_check
      _
    $region27: #{tpu_custom_call.1} parent=1 // pred_check_branch
      %41 = sbr.rel (0) target = $region29
    $region28: #{tpu_custom_call.1} parent=1 // pred_region
      _
    $region29: #{tpu_custom_call.1} parent=1 // pred_fallthru
      _
    // Predicated region
    $region30: #{tpu_custom_call.1} parent=1 // pred_check
      _
    $region31: #{tpu_custom_call.1} parent=1 // pred_check_branch
      %43 = sbr.rel (0) target = $region33
    $region32: #{tpu_custom_call.1} parent=1 // pred_region
      _
    $region33: #{tpu_custom_call.1} parent=1 // pred_fallthru
      _
    // Predicated region
    $region34: #{tpu_custom_call.1} parent=1 // pred_check
      _
    $region35: #{tpu_custom_call.1} parent=1 // pred_check_branch
      %45 = sbr.rel (0) target = $region37
    $region36: #{tpu_custom_call.1} parent=1 // pred_region
      _
    $region37: #{tpu_custom_call.1} parent=1 // pred_fallthru
      _
    // Predicated region
    $region38: #{tpu_custom_call.1} parent=1 // pred_check
      _
    $region39: #{tpu_custom_call.1} parent=1 // pred_check_branch
      %47 = sbr.rel (0) target = $region41
    $region40: #{tpu_custom_call.1} parent=1 // pred_region
      _
    $region41: #{tpu_custom_call.1} parent=1 // pred_fallthru
      _
    // Predicated region
    $region42: #{tpu_custom_call.1} parent=1 // pred_check
      _
    $region43: #{tpu_custom_call.1} parent=1 // pred_check_branch
      %49 = sbr.rel (0) target = $region45
    $region44: #{tpu_custom_call.1} parent=1 // pred_region
      _
    $region45: #{tpu_custom_call.1} parent=1 // pred_fallthru
      _
    // Predicated region
    $region46: #{tpu_custom_call.1} parent=1 // pred_check
      _
    $region47: #{tpu_custom_call.1} parent=1 // pred_check_branch
      %51 = sbr.rel (0) target = $region49
    $region48: #{tpu_custom_call.1} parent=1 // pred_region
      _
    $region49: #{tpu_custom_call.1} parent=1 // pred_fallthru
      _
    // Predicated region
    $region50: #{tpu_custom_call.1} parent=1 // pred_check
      _
    $region51: #{tpu_custom_call.1} parent=1 // pred_check_branch
      %53 = sbr.rel (0) target = $region53
    $region52: #{tpu_custom_call.1} parent=1 // pred_region
      _
    $region53: #{tpu_custom_call.1} parent=1 // pred_fallthru
      _
    // Predicated region
    $region54: #{tpu_custom_call.1} parent=1 // pred_check
      _
    $region55: #{tpu_custom_call.1} parent=1 // pred_check_branch
      %55 = sbr.rel (0) target = $region57
    $region56: #{tpu_custom_call.1} parent=1 // pred_region
      _
    $region57: #{tpu_custom_call.1} parent=1 // pred_fallthru
      _
    // Predicated region
    $region58: #{tpu_custom_call.1} parent=1 // pred_check
      _
    $region59: #{tpu_custom_call.1} parent=1 // pred_check_branch
      %57 = sbr.rel (0) target = $region61
    $region60: #{tpu_custom_call.1} parent=1 // pred_region
      _
    $region61: #{tpu_custom_call.1} parent=1 // pred_fallthru
      _
    // Predicated region
    $region62: #{tpu_custom_call.1} parent=1 // pred_check
      _
    $region63: #{tpu_custom_call.1} parent=1 // pred_check_branch
      %59 = sbr.rel (0) target = $region65
    $region64: #{tpu_custom_call.1} parent=1 // pred_region
      _
    $region65: #{tpu_custom_call.1} parent=1 // pred_fallthru
      _
    // Predicated region
    $region66: #{tpu_custom_call.1} parent=1 // pred_check
      _
    $region67: #{tpu_custom_call.1} parent=1 // pred_check_branch
      %61 = sbr.rel (0) target = $region69
    $region68: #{tpu_custom_call.1} parent=1 // pred_region
      _
    $region69: #{tpu_custom_call.1} parent=1 // pred_fallthru
      _
    // Predicated region
    $region70: #{tpu_custom_call.1} parent=1 // pred_check
      _
    $region71: #{tpu_custom_call.1} parent=1 // pred_check_branch
      %63 = sbr.rel (0) target = $region73
    $region72: #{tpu_custom_call.1} parent=1 // pred_region
      _
    $region73: #{tpu_custom_call.1} parent=1 // pred_fallthru
      _
    // Predicated region
    $region74: #{tpu_custom_call.1} parent=1 // pred_check
      _
    $region75: #{tpu_custom_call.1} parent=1 // pred_check_branch
      %65 = sbr.rel (0) target = $region77
    $region76: #{tpu_custom_call.1} parent=1 // pred_region
      _
    $region77: #{tpu_custom_call.1} parent=1 // pred_fallthru
      _
    // Predicated region
    $region78: #{tpu_custom_call.1} parent=1 // pred_check
      _
    $region79: #{tpu_custom_call.1} parent=1 // pred_check_branch
      %67 = sbr.rel (0) target = $region81
    $region80: #{tpu_custom_call.1} parent=1 // pred_region
      _
    $region81: #{tpu_custom_call.1} parent=1 // pred_fallthru
      _
    %v68 = vld [vmem:[%s0] sm:$0xff]
    %v69 = vld [vmem:[%s3] sm:$0xff]
    %v70 = vld [vmem:[%s3 + $0x8] sm:$0xff]
    %v71 = vld [vmem:[%s3 + $0x10] sm:$0xff]
    %v72 = vld [vmem:[%s3 + $0x18] sm:$0xff]
    %v73 = vld [vmem:[%s3 + $0x20] sm:$0xff]
    %v74 = vld [vmem:[%s3 + $0x28] sm:$0xff]
    %v75 = vld [vmem:[%s3 + $0x30] sm:$0xff]
    %v76 = vld [vmem:[%s3 + $0x38] sm:$0xff]
    %v77 = vld [vmem:[%s4] sm:$0x1]
    %v79 = vlaneseq
    %v80 = vshrl.u32 %v79, 7
    %v81 = vsub.s32 0, %v80
    %v82 = vrot.slane %v77, %v81
    %vm84 = vcmask 523264
    %v86 = vsel %vm84, %v68, 0
    %88 = vmatprep.subr.mxu0 0.0
    %89 = vmatpush1.msra.mxu0 %v69
    %90 = vmatprep.subr.mxu0 0.0
    %91 = vmatpush1.msra.mxu0 %v70
    %92 = vmatprep.subr.mxu0 0.0
    %93 = vmatpush1.msra.mxu0 %v71
    %94 = vmatprep.subr.mxu0 0.0
    %95 = vmatpush1.msra.mxu0 %v72
    %96 = vmatprep.subr.mxu0 0.0
    %97 = vmatpush1.msra.mxu0 %v73
    %98 = vmatprep.subr.mxu0 0.0
    %99 = vmatpush1.msra.mxu0 %v74
    %100 = vmatprep.subr.mxu0 0.0
    %101 = vmatpush1.msra.mxu0 %v75
    %102 = vmatprep.subr.mxu0 0.0
    %103 = vmatpush1.msra.mxu0 %v76
    %104 = vmatprep.subr.mxu0 0.0
    %105 = vmatpush1.msra.mxu0 0.0
    %106 = vmatprep.subr.mxu0 0.0
    %107 = vmatpush1.msra.mxu0 0.0
    %108 = vmatprep.subr.mxu0 0.0
    %109 = vmatpush1.msra.mxu0 0.0
    %110 = vmatprep.subr.mxu0 0.0
    %111 = vmatpush1.msra.mxu0 0.0
    %112 = vmatprep.subr.mxu0 0.0
    %113 = vmatpush1.msra.mxu0 0.0
    %114 = vmatprep.subr.mxu0 0.0
    %115 = vmatpush1.msra.mxu0 0.0
    %116 = vmatprep.subr.mxu0 0.0
    %117 = vmatpush1.msra.mxu0 0.0
    %118 = vmatprep.subr.mxu0 0.0
    %119 = vmatpush1.msra.mxu0 0.0
    %120 = vmatprep.subr.mxu0 0.0
    %121 = vmatpush1.msra.mxu0 0.0
    %122 = vmatprep.subr.mxu0 0.0
    %123 = vmatpush1.msra.mxu0 0.0
    %124 = vmatprep.subr.mxu0 0.0
    %125 = vmatpush1.msra.mxu0 0.0
    %126 = vmatprep.subr.mxu0 0.0
    %127 = vmatpush1.msra.mxu0 0.0
    %128 = vmatprep.subr.mxu0 0.0
    %129 = vmatpush1.msra.mxu0 0.0
    %130 = vmatprep.subr.mxu0 0.0
    %131 = vmatpush1.msra.mxu0 0.0
    %132 = vmatprep.subr.mxu0 0.0
    %133 = vmatpush1.msra.mxu0 0.0
    %134 = vmatprep.subr.mxu0 0.0
    %135 = vmatpush1.msra.mxu0 0.0
    %136 = vmatprep.subr.mxu0 0.0
    %137 = vmatpush1.msra.mxu0 0.0
    %138 = vmatprep.subr.mxu0 0.0
    %139 = vmatpush1.msra.mxu0 0.0
    %140 = vmatprep.subr.mxu0 0.0
    %141 = vmatpush1.msra.mxu0 0.0
    %142 = vmatprep.subr.mxu0 0.0
    %143 = vmatpush1.msra.mxu0 0.0
    %144 = vmatprep.subr.mxu0 0.0
    %145 = vmatpush1.msra.mxu0 0.0
    %146 = vmatprep.subr.mxu0 0.0
    %147 = vmatpush1.msra.mxu0 0.0
    %148 = vmatprep.subr.mxu0 0.0
    %149 = vmatpush1.msra.mxu0 0.0
    %150 = vmatprep.subr.mxu0 0.0
    %151 = vmatpush1.msra.mxu0 0.0
    %152 = vmatprep.mubr.f32.mxu0 0.0
    %153 = vmatmul.mubr.f32.gmra.mrb[0].mxu0 %v86
    %v154 = vpop.f32.mrb[0].mxu0
    %v155 = vadd.f32 %v82, %v154
    %v156 = vpop.f32.mrb[0].mxu0
    %157 = vdwg.mxu0
    %v158 = vmax.f32 %v155, 0.0
    %vm159 = vcmask 261120
    %v160 = vsel %vm159, %v158, 0.0
    %161 = vadd.xlane.f32.xlu0 %v160
    %v162 = vpop.xlane.xlu0 %161
    %v163 = vrcp.pop 32.0
    %v164 = vmul.f32 %v162, %v163
    %v165 = vsub.f32 %v158, %v164
    %v166 = vmul.f32 %v165, %v165
    %v167 = vsel %vm159, %v166, 0.0
    %168 = vadd.xlane.f32.xlu0 %v167
    %v169 = vpop.xlane.xlu0 %168
    %v170 = vmul.f32 %v169, %v163
    %v171 = vadd.f32 %v170, 1e-05
    %v172 = vrsqrt.pop %v171
    %v173 = vmul.f32 %v165, %v172
    %v174 = vld [vmem:[%s9] sm:$0x1]
    %v176 = vlaneseq
    %v177 = vshrl.u32 %v176, 7
    %v178 = vsub.s32 0, %v177
    %v179 = vrot.slane %v174, %v178
    %v181 = vmul.f32 %v173, %v179
    %v182 = vld [vmem:[%s10] sm:$0x1]
    %v184 = vlaneseq
    %v185 = vshrl.u32 %v184, 7
    %v186 = vsub.s32 0, %v185
    %v187 = vrot.slane %v182, %v186
    %v189 = vadd.f32 %v181, %v187
    %v190 = vld [vmem:[%s1] sm:$0xff]
    %v191 = vld [vmem:[%s5] sm:$0xff]
    %v192 = vld [vmem:[%s5 + $0x8] sm:$0xff]
    %v193 = vld [vmem:[%s5 + $0x10] sm:$0xff]
    %v194 = vld [vmem:[%s5 + $0x18] sm:$0xff]
    %v195 = vld [vmem:[%s5 + $0x20] sm:$0xff]
    %v196 = vld [vmem:[%s5 + $0x28] sm:$0xff]
    %v197 = vld [vmem:[%s5 + $0x30] sm:$0xff]
    %v198 = vld [vmem:[%s5 + $0x38] sm:$0xff]
    %v199 = vld [vmem:[%s5 + $0x40] sm:$0xff]
    %v200 = vld [vmem:[%s5 + $0x48] sm:$0xff]
    %v201 = vld [vmem:[%s5 + $0x50] sm:$0xff]
    %v202 = vld [vmem:[%s5 + $0x58] sm:$0xff]
    %v203 = vld [vmem:[%s5 + $0x60] sm:$0xff]
    %v204 = vld [vmem:[%s5 + $0x68] sm:$0xff]
    %v205 = vld [vmem:[%s5 + $0x70] sm:$0xff]
    %v206 = vld [vmem:[%s5 + $0x78] sm:$0xff]
    %v207 = vld [vmem:[%s6] sm:$0x1]
    %v209 = vlaneseq
    %v210 = vshrl.u32 %v209, 7
    %v211 = vsub.s32 0, %v210
    %v212 = vrot.slane %v207, %v211
    %214 = vmatprep.subr.mxu0 0.0
    %215 = vmatpush1.msra.mxu0 %v191
    %216 = vmatprep.subr.mxu0 0.0
    %217 = vmatpush1.msra.mxu0 %v192
    %218 = vmatprep.subr.mxu0 0.0
    %219 = vmatpush1.msra.mxu0 %v193
    %220 = vmatprep.subr.mxu0 0.0
    %221 = vmatpush1.msra.mxu0 %v194
    %222 = vmatprep.subr.mxu0 0.0
    %223 = vmatpush1.msra.mxu0 %v195
    %224 = vmatprep.subr.mxu0 0.0
    %225 = vmatpush1.msra.mxu0 %v196
    %226 = vmatprep.subr.mxu0 0.0
    %227 = vmatpush1.msra.mxu0 %v197
    %228 = vmatprep.subr.mxu0 0.0
    %229 = vmatpush1.msra.mxu0 %v198
    %230 = vmatprep.subr.mxu0 0.0
    %231 = vmatpush1.msra.mxu0 %v199
    %232 = vmatprep.subr.mxu0 0.0
    %233 = vmatpush1.msra.mxu0 %v200
    %234 = vmatprep.subr.mxu0 0.0
    %235 = vmatpush1.msra.mxu0 %v201
    %236 = vmatprep.subr.mxu0 0.0
    %237 = vmatpush1.msra.mxu0 %v202
    %238 = vmatprep.subr.mxu0 0.0
    %239 = vmatpush1.msra.mxu0 %v203
    %240 = vmatprep.subr.mxu0 0.0
    %241 = vmatpush1.msra.mxu0 %v204
    %242 = vmatprep.subr.mxu0 0.0
    %243 = vmatpush1.msra.mxu0 %v205
    %244 = vmatprep.subr.mxu0 0.0
    %245 = vmatpush1.msra.mxu0 %v206
    %246 = vmatprep.subr.mxu0 0.0
    %247 = vmatpush1.msra.mxu0 0.0
    %248 = vmatprep.subr.mxu0 0.0
    %249 = vmatpush1.msra.mxu0 0.0
    %250 = vmatprep.subr.mxu0 0.0
    %251 = vmatpush1.msra.mxu0 0.0
    %252 = vmatprep.subr.mxu0 0.0
    %253 = vmatpush1.msra.mxu0 0.0
    %254 = vmatprep.subr.mxu0 0.0
    %255 = vmatpush1.msra.mxu0 0.0
    %256 = vmatprep.subr.mxu0 0.0
    %257 = vmatpush1.msra.mxu0 0.0
    %258 = vmatprep.subr.mxu0 0.0
    %259 = vmatpush1.msra.mxu0 0.0
    %260 = vmatprep.subr.mxu0 0.0
    %261 = vmatpush1.msra.mxu0 0.0
    %262 = vmatprep.subr.mxu0 0.0
    %263 = vmatpush1.msra.mxu0 0.0
    %264 = vmatprep.subr.mxu0 0.0
    %265 = vmatpush1.msra.mxu0 0.0
    %266 = vmatprep.subr.mxu0 0.0
    %267 = vmatpush1.msra.mxu0 0.0
    %268 = vmatprep.subr.mxu0 0.0
    %269 = vmatpush1.msra.mxu0 0.0
    %270 = vmatprep.subr.mxu0 0.0
    %271 = vmatpush1.msra.mxu0 0.0
    %272 = vmatprep.subr.mxu0 0.0
    %273 = vmatpush1.msra.mxu0 0.0
    %274 = vmatprep.subr.mxu0 0.0
    %275 = vmatpush1.msra.mxu0 0.0
    %276 = vmatprep.subr.mxu0 0.0
    %277 = vmatpush1.msra.mxu0 0.0
    %278 = vmatprep.mubr.f32.mxu0 0.0
    %279 = vmatmul.mubr.f32.gmra.mrb[0].mxu0 %v190
    %v280 = vpop.f32.mrb[0].mxu0
    %v281 = vadd.f32 %v212, %v280
    %v282 = vpop.f32.mrb[0].mxu0
    %283 = vdwg.mxu0
    %v284 = vmax.f32 %v281, 0.0
    %v285 = vsel %vm159, %v284, 0.0
    %286 = vadd.xlane.f32.xlu0 %v285
    %v287 = vpop.xlane.xlu0 %286
    %v288 = vmul.f32 %v287, %v163
    %v289 = vsub.f32 %v284, %v288
    %v290 = vmul.f32 %v289, %v289
    %v291 = vsel %vm159, %v290, 0.0
    %292 = vadd.xlane.f32.xlu0 %v291
    %v293 = vpop.xlane.xlu0 %292
    %v294 = vmul.f32 %v293, %v163
    %v295 = vadd.f32 %v294, 1e-05
    %v296 = vrsqrt.pop %v295
    %v297 = vmul.f32 %v289, %v296
    %v298 = vld [vmem:[%s11] sm:$0x1]
    %v300 = vlaneseq
    %v301 = vshrl.u32 %v300, 7
    %v302 = vsub.s32 0, %v301
    %v303 = vrot.slane %v298, %v302
    %v305 = vmul.f32 %v297, %v303
    %v306 = vld [vmem:[%s12] sm:$0x1]
    %v308 = vlaneseq
    %v309 = vshrl.u32 %v308, 7
    %v310 = vsub.s32 0, %v309
    %v311 = vrot.slane %v306, %v310
    %v313 = vadd.f32 %v305, %v311
    %v314 = vld [vmem:[%s2] sm:$0xff]
    %v315 = vld [vmem:[%s7] sm:$0xff]
    %v316 = vld [vmem:[%s8] sm:$0x1]
    %v318 = vlaneseq
    %v319 = vshrl.u32 %v318, 7
    %v320 = vsub.s32 0, %v319
    %v321 = vrot.slane %v316, %v320
    %vm323 = vcmask 64512
    %v325 = vsel %vm323, %v314, 0
    %327 = vmatprep.subr.mxu0 0.0
    %328 = vmatpush1.msra.mxu0 %v315
    %329 = vmatprep.subr.mxu0 0.0
    %330 = vmatpush1.msra.mxu0 0.0
    %331 = vmatprep.subr.mxu0 0.0
    %332 = vmatpush1.msra.mxu0 0.0
    %333 = vmatprep.subr.mxu0 0.0
    %334 = vmatpush1.msra.mxu0 0.0
    %335 = vmatprep.subr.mxu0 0.0
    %336 = vmatpush1.msra.mxu0 0.0
    %337 = vmatprep.subr.mxu0 0.0
    %338 = vmatpush1.msra.mxu0 0.0
    %339 = vmatprep.subr.mxu0 0.0
    %340 = vmatpush1.msra.mxu0 0.0
    %341 = vmatprep.subr.mxu0 0.0
    %342 = vmatpush1.msra.mxu0 0.0
    %343 = vmatprep.subr.mxu0 0.0
    %344 = vmatpush1.msra.mxu0 0.0
    %345 = vmatprep.subr.mxu0 0.0
    %346 = vmatpush1.msra.mxu0 0.0
    %347 = vmatprep.subr.mxu0 0.0
    %348 = vmatpush1.msra.mxu0 0.0
    %349 = vmatprep.subr.mxu0 0.0
    %350 = vmatpush1.msra.mxu0 0.0
    %351 = vmatprep.subr.mxu0 0.0
    %352 = vmatpush1.msra.mxu0 0.0
    %353 = vmatprep.subr.mxu0 0.0
    %354 = vmatpush1.msra.mxu0 0.0
    %355 = vmatprep.subr.mxu0 0.0
    %356 = vmatpush1.msra.mxu0 0.0
    %357 = vmatprep.subr.mxu0 0.0
    %358 = vmatpush1.msra.mxu0 0.0
    %359 = vmatprep.subr.mxu0 0.0
    %360 = vmatpush1.msra.mxu0 0.0
    %361 = vmatprep.subr.mxu0 0.0
    %362 = vmatpush1.msra.mxu0 0.0
    %363 = vmatprep.subr.mxu0 0.0
    %364 = vmatpush1.msra.mxu0 0.0
    %365 = vmatprep.subr.mxu0 0.0
    %366 = vmatpush1.msra.mxu0 0.0
    %367 = vmatprep.subr.mxu0 0.0
    %368 = vmatpush1.msra.mxu0 0.0
    %369 = vmatprep.subr.mxu0 0.0
    %370 = vmatpush1.msra.mxu0 0.0
    %371 = vmatprep.subr.mxu0 0.0
    %372 = vmatpush1.msra.mxu0 0.0
    %373 = vmatprep.subr.mxu0 0.0
    %374 = vmatpush1.msra.mxu0 0.0
    %375 = vmatprep.subr.mxu0 0.0
    %376 = vmatpush1.msra.mxu0 0.0
    %377 = vmatprep.subr.mxu0 0.0
    %378 = vmatpush1.msra.mxu0 0.0
    %379 = vmatprep.subr.mxu0 0.0
    %380 = vmatpush1.msra.mxu0 0.0
    %381 = vmatprep.subr.mxu0 0.0
    %382 = vmatpush1.msra.mxu0 0.0
    %383 = vmatprep.subr.mxu0 0.0
    %384 = vmatpush1.msra.mxu0 0.0
    %385 = vmatprep.subr.mxu0 0.0
    %386 = vmatpush1.msra.mxu0 0.0
    %387 = vmatprep.subr.mxu0 0.0
    %388 = vmatpush1.msra.mxu0 0.0
    %389 = vmatprep.subr.mxu0 0.0
    %390 = vmatpush1.msra.mxu0 0.0
    %391 = vmatprep.mubr.f32.mxu0 0.0
    %392 = vmatmul.mubr.f32.gmra.mrb[0].mxu0 %v325
    %v393 = vpop.f32.mrb[0].mxu0
    %v394 = vadd.f32 %v321, %v393
    %v395 = vpop.f32.mrb[0].mxu0
    %396 = vdwg.mxu0
    %v397 = vmax.f32 %v394, 0.0
    %v398 = vsel %vm159, %v397, 0.0
    %399 = vadd.xlane.f32.xlu0 %v398
    %v400 = vpop.xlane.xlu0 %399
    %v401 = vmul.f32 %v400, %v163
    %v402 = vsub.f32 %v397, %v401
    %v403 = vmul.f32 %v402, %v402
    %v404 = vsel %vm159, %v403, 0.0
    %405 = vadd.xlane.f32.xlu0 %v404
    %v406 = vpop.xlane.xlu0 %405
    %v407 = vmul.f32 %v406, %v163
    %v408 = vadd.f32 %v407, 1e-05
    %v409 = vrsqrt.pop %v408
    %v410 = vmul.f32 %v402, %v409
    %v411 = vld [vmem:[%s13] sm:$0x1]
    %v413 = vlaneseq
    %v414 = vshrl.u32 %v413, 7
    %v415 = vsub.s32 0, %v414
    %v416 = vrot.slane %v411, %v415
    %v418 = vmul.f32 %v410, %v416
    %v419 = vld [vmem:[%s14] sm:$0x1]
    %v421 = vlaneseq
    %v422 = vshrl.u32 %v421, 7
    %v423 = vsub.s32 0, %v422
    %v424 = vrot.slane %v419, %v423
    %v426 = vadd.f32 %v418, %v424
    %428 = vrot.lane.b32.xlu0 %v313, 32
    %v429 = vpop.permute.xlu0 %428
    %432 = vrot.lane.b32.xlu0 %v426, 64
    %v433 = vpop.permute.xlu0 %432
    %v435 = vsel %vm159, %v189, %v429
    %v436 = vsel %vm84, %v435, %v433
    %v437 = vld [vmem:[%s15] sm:$0xff]
    %v438 = vld [vmem:[%s15 + $0x8] sm:$0xff]
    %v439 = vld [vmem:[%s15 + $0x10] sm:$0xff]
    %v440 = vld [vmem:[%s15 + $0x18] sm:$0xff]
    %v441 = vld [vmem:[%s15 + $0x20] sm:$0xff]
    %v442 = vld [vmem:[%s15 + $0x28] sm:$0xff]
    %v443 = vld [vmem:[%s15 + $0x30] sm:$0xff]
    %v444 = vld [vmem:[%s15 + $0x38] sm:$0xff]
    %v445 = vld [vmem:[%s15 + $0x40] sm:$0xff]
    %v446 = vld [vmem:[%s15 + $0x48] sm:$0xff]
    %v447 = vld [vmem:[%s15 + $0x50] sm:$0xff]
    %v448 = vld [vmem:[%s15 + $0x58] sm:$0xff]
    %v449 = vld [vmem:[%s16] sm:$0x1]
    %v451 = vlaneseq
    %v452 = vshrl.u32 %v451, 7
    %v453 = vsub.s32 0, %v452
    %v454 = vrot.slane %v449, %v453
    %vm456 = vcmask 785408
    %v458 = vsel %vm456, %v436, 0
    %460 = vmatprep.subr.mxu0 0.0
    %461 = vmatpush1.msra.mxu0 %v437
    %462 = vmatprep.subr.mxu0 0.0
    %463 = vmatpush1.msra.mxu0 %v438
    %464 = vmatprep.subr.mxu0 0.0
    %465 = vmatpush1.msra.mxu0 %v439
    %466 = vmatprep.subr.mxu0 0.0
    %467 = vmatpush1.msra.mxu0 %v440
    %468 = vmatprep.subr.mxu0 0.0
    %469 = vmatpush1.msra.mxu0 %v441
    %470 = vmatprep.subr.mxu0 0.0
    %471 = vmatpush1.msra.mxu0 %v442
    %472 = vmatprep.subr.mxu0 0.0
    %473 = vmatpush1.msra.mxu0 %v443
    %474 = vmatprep.subr.mxu0 0.0
    %475 = vmatpush1.msra.mxu0 %v444
    %476 = vmatprep.subr.mxu0 0.0
    %477 = vmatpush1.msra.mxu0 %v445
    %478 = vmatprep.subr.mxu0 0.0
    %479 = vmatpush1.msra.mxu0 %v446
    %480 = vmatprep.subr.mxu0 0.0
    %481 = vmatpush1.msra.mxu0 %v447
    %482 = vmatprep.subr.mxu0 0.0
    %483 = vmatpush1.msra.mxu0 %v448
    %484 = vmatprep.subr.mxu0 0.0
    %485 = vmatpush1.msra.mxu0 0.0
    %486 = vmatprep.subr.mxu0 0.0
    %487 = vmatpush1.msra.mxu0 0.0
    %488 = vmatprep.subr.mxu0 0.0
    %489 = vmatpush1.msra.mxu0 0.0
    %490 = vmatprep.subr.mxu0 0.0
    %491 = vmatpush1.msra.mxu0 0.0
    %492 = vmatprep.subr.mxu0 0.0
    %493 = vmatpush1.msra.mxu0 0.0
    %494 = vmatprep.subr.mxu0 0.0
    %495 = vmatpush1.msra.mxu0 0.0
    %496 = vmatprep.subr.mxu0 0.0
    %497 = vmatpush1.msra.mxu0 0.0
    %498 = vmatprep.subr.mxu0 0.0
    %499 = vmatpush1.msra.mxu0 0.0
    %500 = vmatprep.subr.mxu0 0.0
    %501 = vmatpush1.msra.mxu0 0.0
    %502 = vmatprep.subr.mxu0 0.0
    %503 = vmatpush1.msra.mxu0 0.0
    %504 = vmatprep.subr.mxu0 0.0
    %505 = vmatpush1.msra.mxu0 0.0
    %506 = vmatprep.subr.mxu0 0.0
    %507 = vmatpush1.msra.mxu0 0.0
    %508 = vmatprep.subr.mxu0 0.0
    %509 = vmatpush1.msra.mxu0 0.0
    %510 = vmatprep.subr.mxu0 0.0
    %511 = vmatpush1.msra.mxu0 0.0
    %512 = vmatprep.subr.mxu0 0.0
    %513 = vmatpush1.msra.mxu0 0.0
    %514 = vmatprep.subr.mxu0 0.0
    %515 = vmatpush1.msra.mxu0 0.0
    %516 = vmatprep.subr.mxu0 0.0
    %517 = vmatpush1.msra.mxu0 0.0
    %518 = vmatprep.subr.mxu0 0.0
    %519 = vmatpush1.msra.mxu0 0.0
    %520 = vmatprep.subr.mxu0 0.0
    %521 = vmatpush1.msra.mxu0 0.0
    %522 = vmatprep.subr.mxu0 0.0
    %523 = vmatpush1.msra.mxu0 0.0
    %524 = vmatprep.mubr.f32.mxu0 0.0
    %525 = vmatmul.mubr.f32.gmra.mrb[0].mxu0 %v458
    %v526 = vpop.f32.mrb[0].mxu0
    %v527 = vadd.f32 %v454, %v526
    %v528 = vpop.f32.mrb[0].mxu0
    %529 = vdwg.mxu0
    %v530 = vlaneseq
    %v531 = vand.u32 %v530, 127
    %vm532 = vcmp.eq.s32.totalorder %v531, 0
    %v533 = vsel %vm532, %v527, 0.0
    %534 = vadd.xlane.f32.xlu0 %v533
    %v535 = vpop.xlane.xlu0 %534
    %vm536 = vcmp.eq.s32.totalorder %v531, 1
    %v537 = vsel %vm536, %v527, 0.0
    %538 = vadd.xlane.f32.xlu0 %v537
    %v539 = vpop.xlane.xlu0 %538
    %vm540 = vcmp.eq.s32.totalorder %v531, 2
    %v541 = vsel %vm540, %v527, 0.0
    %542 = vadd.xlane.f32.xlu0 %v541
    %v543 = vpop.xlane.xlu0 %542
    %v544 = vmax.f32 %v535, %v539
    %v545 = vmax.f32 %v544, %v543
    %v546 = vsub.f32 %v535, %v545
    %v547 = vmul.f32 %v546, 1.442695
    %v548 = vpow.pop %v547
    %v549 = vsub.f32 %v539, %v545
    %v550 = vmul.f32 %v549, 1.442695
    %v551 = vpow.pop %v550
    %v552 = vsub.f32 %v543, %v545
    %v553 = vmul.f32 %v552, 1.442695
    %v554 = vpow.pop %v553
    %v555 = vadd.f32 %v548, %v551
    %v556 = vadd.f32 %v555, %v554
    %v557 = vrcp.pop %v556
    %v558 = vmul.f32 %v548, %v557
    %v559 = vmul.f32 %v551, %v557
    %v560 = vmul.f32 %v554, %v557
    %v561 = vmul.f32 %v189, %v558
    %v562 = vmul.f32 %v313, %v559
    %v563 = vmul.f32 %v426, %v560
    %565 = vrot.lane.b32.xlu0 %v562, 32
    %v566 = vpop.permute.xlu0 %565
    %569 = vrot.lane.b32.xlu0 %v563, 64
    %v570 = vpop.permute.xlu0 %569
    %v572 = vsel %vm159, %v561, %v566
    %v573 = vsel %vm84, %v572, %v570
    %v574 = vld [vmem:[%s17] sm:$0xff]
    %v575 = vld [vmem:[%s17 + $0x8] sm:$0xff]
    %v576 = vld [vmem:[%s17 + $0x10] sm:$0xff]
    %v577 = vld [vmem:[%s17 + $0x18] sm:$0xff]
    %v578 = vld [vmem:[%s17 + $0x20] sm:$0xff]
    %v579 = vld [vmem:[%s17 + $0x28] sm:$0xff]
    %v580 = vld [vmem:[%s17 + $0x30] sm:$0xff]
    %v581 = vld [vmem:[%s17 + $0x38] sm:$0xff]
    %v582 = vld [vmem:[%s17 + $0x40] sm:$0xff]
    %v583 = vld [vmem:[%s17 + $0x48] sm:$0xff]
    %v584 = vld [vmem:[%s17 + $0x50] sm:$0xff]
    %v585 = vld [vmem:[%s17 + $0x58] sm:$0xff]
    %v586 = vld [vmem:[%s18] sm:$0x1]
    %v588 = vlaneseq
    %v589 = vshrl.u32 %v588, 7
    %v590 = vsub.s32 0, %v589
    %v591 = vrot.slane %v586, %v590
    %v594 = vsel %vm456, %v573, 0
    %596 = vmatprep.subr.mxu0 0.0
    %597 = vmatpush1.msra.mxu0 %v574
    %598 = vmatprep.subr.mxu0 0.0
    %599 = vmatpush1.msra.mxu0 %v575
    %600 = vmatprep.subr.mxu0 0.0
    %601 = vmatpush1.msra.mxu0 %v576
    %602 = vmatprep.subr.mxu0 0.0
    %603 = vmatpush1.msra.mxu0 %v577
    %604 = vmatprep.subr.mxu0 0.0
    %605 = vmatpush1.msra.mxu0 %v578
    %606 = vmatprep.subr.mxu0 0.0
    %607 = vmatpush1.msra.mxu0 %v579
    %608 = vmatprep.subr.mxu0 0.0
    %609 = vmatpush1.msra.mxu0 %v580
    %610 = vmatprep.subr.mxu0 0.0
    %611 = vmatpush1.msra.mxu0 %v581
    %612 = vmatprep.subr.mxu0 0.0
    %613 = vmatpush1.msra.mxu0 %v582
    %614 = vmatprep.subr.mxu0 0.0
    %615 = vmatpush1.msra.mxu0 %v583
    %616 = vmatprep.subr.mxu0 0.0
    %617 = vmatpush1.msra.mxu0 %v584
    %618 = vmatprep.subr.mxu0 0.0
    %619 = vmatpush1.msra.mxu0 %v585
    %620 = vmatprep.subr.mxu0 0.0
    %621 = vmatpush1.msra.mxu0 0.0
    %622 = vmatprep.subr.mxu0 0.0
    %623 = vmatpush1.msra.mxu0 0.0
    %624 = vmatprep.subr.mxu0 0.0
    %625 = vmatpush1.msra.mxu0 0.0
    %626 = vmatprep.subr.mxu0 0.0
    %627 = vmatpush1.msra.mxu0 0.0
    %628 = vmatprep.subr.mxu0 0.0
    %629 = vmatpush1.msra.mxu0 0.0
    %630 = vmatprep.subr.mxu0 0.0
    %631 = vmatpush1.msra.mxu0 0.0
    %632 = vmatprep.subr.mxu0 0.0
    %633 = vmatpush1.msra.mxu0 0.0
    %634 = vmatprep.subr.mxu0 0.0
    %635 = vmatpush1.msra.mxu0 0.0
    %636 = vmatprep.subr.mxu0 0.0
    %637 = vmatpush1.msra.mxu0 0.0
    %638 = vmatprep.subr.mxu0 0.0
    %639 = vmatpush1.msra.mxu0 0.0
    %640 = vmatprep.subr.mxu0 0.0
    %641 = vmatpush1.msra.mxu0 0.0
    %642 = vmatprep.subr.mxu0 0.0
    %643 = vmatpush1.msra.mxu0 0.0
    %644 = vmatprep.subr.mxu0 0.0
    %645 = vmatpush1.msra.mxu0 0.0
    %646 = vmatprep.subr.mxu0 0.0
    %647 = vmatpush1.msra.mxu0 0.0
    %648 = vmatprep.subr.mxu0 0.0
    %649 = vmatpush1.msra.mxu0 0.0
    %650 = vmatprep.subr.mxu0 0.0
    %651 = vmatpush1.msra.mxu0 0.0
    %652 = vmatprep.subr.mxu0 0.0
    %653 = vmatpush1.msra.mxu0 0.0
    %654 = vmatprep.subr.mxu0 0.0
    %655 = vmatpush1.msra.mxu0 0.0
    %656 = vmatprep.subr.mxu0 0.0
    %657 = vmatpush1.msra.mxu0 0.0
    %658 = vmatprep.subr.mxu0 0.0
    %659 = vmatpush1.msra.mxu0 0.0
    %660 = vmatprep.mubr.f32.mxu0 0.0
    %661 = vmatmul.mubr.f32.gmra.mrb[0].mxu0 %v594
    %v662 = vpop.f32.mrb[0].mxu0
    %v663 = vadd.f32 %v591, %v662
    %v664 = vpop.f32.mrb[0].mxu0
    %665 = vdwg.mxu0
    %vm666 = vcmp.lt.s32.totalorder %v531, 32
    %v667 = vsel %vm666, %v663, 0.0
    %668 = vadd.xlane.f32.xlu0 %v667
    %v669 = vpop.xlane.xlu0 %668
    %vm670 = vcmp.ge.s32.totalorder %v531, 32
    %vm671 = vcmp.lt.s32.totalorder %v531, 64
    %vm672 = vmand %vm670, %vm671
    %v673 = vsel %vm672, %v663, 0.0
    %674 = vadd.xlane.f32.xlu0 %v673
    %v675 = vpop.xlane.xlu0 %674
    %vm676 = vcmp.eq.s32.totalorder %v531, 96
    %v677 = vsel %vm676, %v663, 0.0
    %678 = vadd.xlane.f32.xlu0 %v677
    %v679 = vpop.xlane.xlu0 %678
    %vm680 = vcmp.eq.s32.totalorder %v531, 97
    %v681 = vsel %vm680, %v663, 0.0
    %682 = vadd.xlane.f32.xlu0 %v681
    %v683 = vpop.xlane.xlu0 %682
    %v684 = vxor.u32 %v679, 2147483648
    %v685 = vmul.f32 %v684, 1.442695
    %v686 = vpow.pop %v685
    %v687 = vadd.f32 %v686, 1.0
    %v688 = vrcp.pop %v687
    %v689 = vmul.f32 1.0, %v688
    %v690 = vmul.f32 %v669, %v675
    %v691 = vmul.f32 %v690, %v683
    %v692 = vld [vmem:[#allocation2] sm:$0x1]
    %v694 = vlaneseq
    %v695 = vshrl.u32 %v694, 7
    %v696 = vsub.s32 0, %v695
    %v697 = vrot.slane %v692, %v696
    %v699 = vadd.f32 %v691, %v697
    %v700 = vxor.u32 %v699, 2147483648
    %v701 = vmul.f32 %v700, 1.442695
    %v702 = vpow.pop %v701
    %v703 = vadd.f32 %v702, 1.0
    %v704 = vrcp.pop %v703
    %v705 = vmul.f32 1.0, %v704
    %v706 = vsel %vm532, 1, 0
    %v707 = vcvt.s32.f32 %v706
    %v708 = vmul.f32 %v689, %v707
    %v709 = vsel %vm536, 1, 0
    %v710 = vcvt.s32.f32 %v709
    %712 = vset.pattern.permute.xlu0 0
    %713 = vperm.xlu0 %712, %v705
    %v714 = vpop.permute.xlu0 %713
    %v716 = vmul.f32 %v714, %v710
    %v717 = vadd.f32 %v708, %v716
    %v718 = vsel %vm540, 1, 0
    %v719 = vcvt.s32.f32 %v718
    %v720 = vmul.f32 %v558, %v719
    %v721 = vadd.f32 %v717, %v720
    %vm722 = vcmp.eq.s32.totalorder %v531, 3
    %v723 = vsel %vm722, 1, 0
    %v724 = vcvt.s32.f32 %v723
    %v725 = vmul.f32 %v559, %v724
    %v726 = vadd.f32 %v721, %v725
    %vm727 = vcmp.eq.s32.totalorder %v531, 4
    %v728 = vsel %vm727, 1, 0
    %v729 = vcvt.s32.f32 %v728
    %v730 = vmul.f32 %v560, %v729
    %v731 = vadd.f32 %v726, %v730
    %732 = vst [vmem:[#allocation3] sm:$0xff] %v731
    // Predicated region
    $region82: #{tpu_custom_call.1} parent=1 // pred_check
      _
    $region83: #{tpu_custom_call.1} parent=1 // pred_check_branch
      %734 = sbr.rel (0) target = $region85
    $region84: #{tpu_custom_call.1} parent=1 // pred_region
      %s736 = ssub.s32 128, 128
      %737 = vsyncadd [#allocation4], %s736
      %s739 = sshll.u32 [#allocation3], 4
      %s740 = int_to_ptr.vmem [resolvable:$true] %s739
      %742 = dma.vmem_to_hbm [thread:$0]  %s740, 128, %s20, [#allocation4]
    $region85: #{tpu_custom_call.1} parent=1 // pred_fallthru
      _
    // Predicated region
    $region86: #{tpu_custom_call.1} parent=1 // pred_check
      _
    $region87: #{tpu_custom_call.1} parent=1 // pred_check_branch
      %744 = sbr.rel (0) target = $region89
    $region88: #{tpu_custom_call.1} parent=1 // pred_region
      %745 = dma.done [#allocation4], 128
    $region89: #{tpu_custom_call.1} parent=1 // pred_fallthru
      _
    %746 = vsyncpa [#allocation4], 1

</llo_original>
